<compile_context>
chip_gen: v5e
topology: v5e:2x2
jax: 0.10.0
libtpu: 0.0.40
codegen_flags: <defaults>
</compile_context>

<pallas_src>
import jax
import jax.numpy as jnp
from jax.experimental import pallas as pl
from jax.experimental.pallas import tpu as pltpu

LN_EPS = 1e-5          # torch.nn.LayerNorm default
LANE = 128             # vreg lane width
SUBLANE = 16           # row-tile granularity (bf16-safe sublane multiple)


def _round_up(x, m):
    return ((x + m - 1) // m) * m


def _ceil_div(a, b):
    return -(-a // b)


def _vmem_capacity_bytes():
    """Physical VMEM per TensorCore; conservative fallback if query fails."""
    try:
        cap = int(pltpu.get_tpu_info().vmem_capacity_bytes)
        if cap > 0:
            return cap
    except Exception:
        pass
    return 64 * 1024 * 1024  # v7x per-TC VMEM (smallest of current generations)


def _make_kernel(inv_hidden):
    """inv_hidden = 1 / (number of *valid* hidden units), baked in statically."""

    def kernel(x_ref, w1_ref, b1_ref, g_ref, beta_ref, w2_ref, b2_ref,
               o_ref, h_ref):
        j = pl.program_id(1)

        # Linear1 -> LayerNorm -> ReLU computed once per batch tile (j == 0) into
        # a VMEM scratch and reused for every D_out tile j.
        # NOTE: this reuse is only correct because the D_out axis is the
        # innermost grid axis and marked "arbitrary" (sequential per core).
        # It must never be reordered ahead of the batch axis or marked parallel.
        @pl.when(j == 0)
        def _():
            # Linear 1 on the MXU: bf16 inputs, f32 accumulation.
            x = x_ref[...].astype(jnp.bfloat16)
            h = jnp.dot(x, w1_ref[...], preferred_element_type=jnp.float32)
            h = h + b1_ref[...]

            # LayerNorm (f32 statistics). Padded hidden columns are exactly zero
            # (zero-padded x cols / w1 cols / b1), so one-pass sums over the
            # padded width equal sums over the valid width.
            mean = jnp.sum(h, axis=-1, keepdims=True) * inv_hidden
            mean_sq = jnp.sum(h * h, axis=-1, keepdims=True) * inv_hidden
            var = jnp.maximum(mean_sq - mean * mean, 0.0)  # clamp cancellation
            # Fold gamma into the normalization scale (one fewer full VPU pass).
            scale = jax.lax.rsqrt(var + LN_EPS) * g_ref[...]
            hn = (h - mean) * scale + beta_ref[...]

            # ReLU; keep activations in bf16 for the second MXU pass.
            h_ref[...] = jnp.maximum(hn, 0.0).astype(jnp.bfloat16)

        # Linear 2 for this output tile.
        y = jnp.dot(h_ref[...], w2_ref[...], preferred_element_type=jnp.float32)
        o_ref[...] = (y + b2_ref[...]).astype(o_ref.dtype)

    return kernel


def prepare_params(params):
    """One-time lane padding + bf16 cast of the weights (hoisted out of the
    per-call path so every forward does not re-pad / re-cast through HBM)."""
    D_in, H = params["w1"].shape
    D_out = params["w2"].shape[1]
    D_in_p, H_p, D_out_p = (_round_up(d, LANE) for d in (D_in, H, D_out))
    return {
        "_prepared": True,
        "dims": (D_in, H, D_out),
        "padded_dims": (D_in_p, H_p, D_out_p),
        "w1": jnp.zeros((D_in_p, H_p), jnp.bfloat16)
                 .at[:D_in, :H].set(params["w1"].astype(jnp.bfloat16)),
        "w2": jnp.zeros((H_p, D_out_p), jnp.bfloat16)
                 .at[:H, :D_out].set(params["w2"].astype(jnp.bfloat16)),
        "b1": jnp.zeros((1, H_p), jnp.float32)
                 .at[0, :H].set(params["b1"].astype(jnp.float32)),
        "gamma": jnp.zeros((1, H_p), jnp.float32)
                 .at[0, :H].set(params["gamma"].astype(jnp.float32)),
        "beta": jnp.zeros((1, H_p), jnp.float32)
                 .at[0, :H].set(params["beta"].astype(jnp.float32)),
        "b2": jnp.zeros((1, D_out_p), jnp.float32)
                 .at[0, :D_out].set(params["b2"].astype(jnp.float32)),
    }


def mlp_layer_forward(x, params, *, tile_b=None, tile_n=None,
                      vmem_budget_bytes=None):
    """x: [batch, input_dim] float32. params: raw dict (w1,b1,gamma,beta,w2,b2)
    or the output of prepare_params()."""
    if not params.get("_prepared", False):
        params = prepare_params(params)

    B = x.shape[0]
    D_in, H, D_out = params["dims"]
    D_in_p, H_p, D_out_p = params["padded_dims"]
    assert x.shape[1] == D_in

    # ---- generation-aware VMEM budget / limit.
    vmem_cap = _vmem_capacity_bytes()
    if vmem_budget_bytes is None:
        vmem_budget_bytes = int(0.65 * vmem_cap)

    def vmem_bytes(tb, tn, resident_w2):
        w_bufs = 1 if resident_w2 else 3          # w2/b2 buffer depth
        x_bytes = 2 * tb * D_in_p * 4             # f32 input, double-buffered
        out_bytes = 2 * tb * tn * 4               # f32 output, double-buffered
        w1_bytes = D_in_p * H_p * 2               # bf16, single-buffered (const idx)
        w2_bytes = w_bufs * H_p * tn * 2          # bf16
        vec_bytes = 3 * H_p * 4 + w_bufs * tn * 4 # b1/gamma/beta + b2
        h_bytes = tb * H_p * 2                    # bf16 activation scratch
        return x_bytes + out_bytes + w1_bytes + w2_bytes + vec_bytes + h_bytes

    # ---- output-dim tile: prefer full residency (w2 DMA'd exactly once).
    if tile_n is None:
        tb_check = min(_round_up(B, SUBLANE), 256)
        if vmem_bytes(tb_check, D_out_p, True) <= vmem_budget_bytes:
            tile_n = D_out_p
        else:
            tile_n = 128
            for cand in (512, 384, 256, 128):
                if D_out_p % cand == 0:
                    tile_n = cand
                    break
    assert D_out_p % tile_n == 0 and tile_n % LANE == 0
    resident_w2 = (tile_n == D_out_p)

    # ---- batch tile: largest multiple of 16 (<=1024) fitting the VMEM budget,
    # balanced so the final tile is not mostly padding, split so the "parallel"
    # batch axis has >=2 tiles when batch allows (keeps both v7x TCs busy).
    if tile_b is None:
        tb = min(_round_up(B, SUBLANE), 1024)
        while tb > SUBLANE and vmem_bytes(tb, tile_n, resident_w2) > vmem_budget_bytes:
            tb = max(_round_up(tb // 2, SUBLANE), SUBLANE)
        n_tiles = _ceil_div(B, tb)
        tb = min(tb, _round_up(_ceil_div(B, n_tiles), SUBLANE))
        if _ceil_div(B, tb) == 1 and B > SUBLANE:
            half = _round_up(_ceil_div(B, 2), SUBLANE)
            if half < tb:
                tb = half
        tile_b = max(tb, SUBLANE)
    assert tile_b % SUBLANE == 0

    B_p = _round_up(B, tile_b)
    grid = (B_p // tile_b, D_out_p // tile_n)

    # Explicit VMEM limit sized from the chosen tiles, capped below capacity
    # to leave headroom for Mosaic internal scratch.
    usage = vmem_bytes(tile_b, tile_n, resident_w2)
    vmem_limit = int(min(0.9 * vmem_cap, max(32 * 1024 * 1024, int(1.35 * usage))))

    # ---- pad input (skip the copy when already aligned).
    if (B_p, D_in_p) == (B, D_in):
        x_p = x
    else:
        x_p = jnp.zeros((B_p, D_in_p), x.dtype).at[:B, :D_in].set(x)

    kernel = _make_kernel(1.0 / float(H))
    w2_bufs = 1 if resident_w2 else 3

    def build_in_specs(use_pipeline_mode):
        def spec(shape, index_map, bufs):
            if use_pipeline_mode and bufs is not None:
                return pl.BlockSpec(shape, index_map,
                                    pipeline_mode=pl.Buffered(bufs))
            return pl.BlockSpec(shape, index_map)
        return [
            spec((tile_b, D_in_p), lambda i, j: (i, 0), None),   # x tile (streamed)
            spec((D_in_p, H_p), lambda i, j: (0, 0), 1),         # w1 (const idx)
            spec((1, H_p), lambda i, j: (0, 0), 1),               # b1
            spec((1, H_p), lambda i, j: (0, 0), 1),               # gamma
            spec((1, H_p), lambda i, j: (0, 0), 1),               # beta
            spec((H_p, tile_n), lambda i, j: (0, j), w2_bufs),    # w2
            spec((1, tile_n), lambda i, j: (0, j), w2_bufs),      # b2
        ]

    def run(use_pipeline_mode):
        return pl.pallas_call(
            kernel,
            out_shape=jax.ShapeDtypeStruct((B_p, D_out_p), x.dtype),
            grid_spec=pltpu.PrefetchScalarGridSpec(
                num_scalar_prefetch=0,
                grid=grid,
                in_specs=build_in_specs(use_pipeline_mode),
                out_specs=pl.BlockSpec((tile_b, tile_n), lambda i, j: (i, j)),
                scratch_shapes=[pltpu.VMEM((tile_b, H_p), jnp.bfloat16)],
            ),
            compiler_params=pltpu.CompilerParams(
                # D_out axis must stay "arbitrary" (h_ref scratch reuse depends
                # on j==0 running first on each core); parallelism comes from
                # the batch axis only.
                dimension_semantics=("parallel", "arbitrary"),
                vmem_limit_bytes=vmem_limit),
        )(x_p, params["w1"], params["b1"], params["gamma"], params["beta"],
          params["w2"], params["b2"])

    try:
        out_p = run(True)
    except Exception:
        # pipeline_mode / pl.Buffered unsupported on this jax version:
        # fall back to default double-buffering (correctness unchanged).
        out_p = run(False)

    if (B_p, D_out_p) == (B, D_out):
        return out_p
    return out_p[:B, :D_out]


def init_mlp_params(key, input_dim, hidden_dim, output_dim):
    """Deterministic init matching weight_init: xavier_uniform linear weights,
    zero biases, LayerNorm gamma=1 / beta=0."""
    k1, k2 = jax.random.split(key, 2)

    def xavier_uniform(k, fan_in, fan_out):
        bound = (6.0 / (fan_in + fan_out)) ** 0.5
        # stored as [in, out] (transpose of torch's [out, in])
        return jax.random.uniform(k, (fan_in, fan_out), jnp.float32,
                                  minval=-bound, maxval=bound)

    return {
        "w1": xavier_uniform(k1, input_dim, hidden_dim),
        "b1": jnp.zeros((hidden_dim,), jnp.float32),
        "gamma": jnp.ones((hidden_dim,), jnp.float32),
        "beta": jnp.zeros((hidden_dim,), jnp.float32),
        "w2": xavier_uniform(k2, hidden_dim, output_dim),
        "b2": jnp.zeros((output_dim,), jnp.float32),
    }


def mlp_layer_ref(x, params):
    """Pure-JAX f32 reference of the same forward pass."""
    h = x @ params["w1"] + params["b1"]
    mean = jnp.mean(h, axis=-1, keepdims=True)
    var = jnp.mean((h - mean) ** 2, axis=-1, keepdims=True)
    h = (h - mean) / jnp.sqrt(var + LN_EPS)
    h = h * params["gamma"] + params["beta"]
    h = jnp.maximum(h, 0.0)
    return h @ params["w2"] + params["b2"]


if __name__ == "__main__":
    key = jax.random.PRNGKey(0)
    k_param, k_x, k_param2, k_x2 = jax.random.split(key, 4)

    # Config 1: small shapes consistent with the module; weight padding/casting
    # hoisted via prepare_params (one-time), w2 fully resident (single HBM fetch).
    batch, input_dim, hidden_dim, output_dim = 8, 16, 32, 16
    params = init_mlp_params(k_param, input_dim, hidden_dim, output_dim)
    prepared = prepare_params(params)
    x = jax.random.normal(k_x, (batch, input_dim), jnp.float32)

    out = jax.block_until_ready(mlp_layer_forward(x, prepared))
    ref = mlp_layer_ref(x, params)
    assert out.shape == (batch, output_dim)
    # bf16 MXU inputs -> looser tolerance vs the f32 reference.
    assert jnp.allclose(out, ref, atol=5e-2, rtol=5e-2), "mismatch vs reference (cfg 1)"

    # Config 2: ragged dims exercising padding, multiple batch tiles, and the
    # streamed-w2 path (tile_n < D_out_p -> Buffered(3) w2/b2, scratch reuse over j).
    batch2, in2, hid2, out2 = 24, 20, 48, 200
    params2 = init_mlp_params(k_param2, in2, hid2, out2)
    prepared2 = prepare_params(params2)
    x2 = jax.random.normal(k_x2, (batch2, in2), jnp.float32)
    y2 = jax.block_until_ready(
        mlp_layer_forward(x2, prepared2, tile_b=16, tile_n=128))
    ref2 = mlp_layer_ref(x2, params2)
    assert y2.shape == (batch2, out2)
    assert jnp.allclose(y2, ref2, atol=5e-2, rtol=5e-2), "mismatch vs reference (cfg 2)"

    print("KERNEL_OK")
</pallas_src>

<mosaic_0001>
module attributes {stable_mosaic.version = 11 : i64} {
  func.func @kernel(%arg0: i32, %arg1: i32, %arg2: memref<16x128xf32, #tpu.memory_space<vmem>>, %arg3: memref<128x128xbf16, #tpu.memory_space<vmem>>, %arg4: memref<1x128xf32, #tpu.memory_space<vmem>>, %arg5: memref<1x128xf32, #tpu.memory_space<vmem>>, %arg6: memref<1x128xf32, #tpu.memory_space<vmem>>, %arg7: memref<128x128xbf16, #tpu.memory_space<vmem>>, %arg8: memref<1x128xf32, #tpu.memory_space<vmem>>, %arg9: memref<16x128xf32, #tpu.memory_space<vmem>>, %arg10: memref<16x128xbf16, #tpu.memory_space<vmem>>) attributes {dimension_semantics = [#tpu.dimension_semantics<parallel>, #tpu.dimension_semantics<arbitrary>], iteration_bounds = array<i64: 1, 1>, scalar_prefetch = 0 : i64, scratch_operands = 1 : i64, tpu.core_type = #tpu.core_type<tc>, window_params = [{transform_indices = @transform_0, window_bounds = array<i64: 16, 128>}, {pipeline_mode = #tpu.pipeline_mode<synchronous>, transform_indices = @transform_1, window_bounds = array<i64: 128, 128>}, {pipeline_mode = #tpu.pipeline_mode<synchronous>, transform_indices = @transform_2, window_bounds = array<i64: 1, 128>}, {pipeline_mode = #tpu.pipeline_mode<synchronous>, transform_indices = @transform_3, window_bounds = array<i64: 1, 128>}, {pipeline_mode = #tpu.pipeline_mode<synchronous>, transform_indices = @transform_4, window_bounds = array<i64: 1, 128>}, {pipeline_mode = #tpu.pipeline_mode<synchronous>, transform_indices = @transform_5, window_bounds = array<i64: 128, 128>}, {pipeline_mode = #tpu.pipeline_mode<synchronous>, transform_indices = @transform_6, window_bounds = array<i64: 1, 128>}, {transform_indices = @transform_7, window_bounds = array<i64: 16, 128>}]} {
    %c0_i32 = arith.constant 0 : i32
    %0 = arith.cmpi eq, %arg1, %c0_i32 : i32
    %1 = arith.extui %0 : i1 to i32
    %c0_i32_0 = arith.constant 0 : i32
    %2 = arith.cmpi ne, %1, %c0_i32_0 : i32
    scf.if %2 {
      %c0_8 = arith.constant 0 : index
      %c0_9 = arith.constant 0 : index
      %10 = vector.load %arg2[%c0_8, %c0_9] : memref<16x128xf32, #tpu.memory_space<vmem>>, vector<16x128xf32>
      %11 = arith.truncf %10 : vector<16x128xf32> to vector<16x128xbf16>
      %c0_10 = arith.constant 0 : index
      %c0_11 = arith.constant 0 : index
      %12 = vector.load %arg3[%c0_10, %c0_11] : memref<128x128xbf16, #tpu.memory_space<vmem>>, vector<128x128xbf16>
      %cst_12 = arith.constant dense<0.000000e+00> : vector<16x128xf32>
      %13 = tpu.matmul %11, %12, %cst_12 {dimension_numbers = #tpu.dot_dimension_numbers<[1], [0], [0], [1], [0, 0, 1, 1], [], []>} : vector<16x128xbf16>, vector<128x128xbf16>, vector<16x128xf32> -> vector<16x128xf32>
      %c0_13 = arith.constant 0 : index
      %c0_14 = arith.constant 0 : index
      %14 = vector.load %arg4[%c0_13, %c0_14] : memref<1x128xf32, #tpu.memory_space<vmem>>, vector<1x128xf32>
      %15 = vector.broadcast %14 : vector<1x128xf32> to vector<16x128xf32>
      %16 = arith.addf %13, %15 : vector<16x128xf32>
      %cst_15 = arith.constant dense<0.000000e+00> : vector<16xf32>
      %17 = vector.multi_reduction <add>, %16, %cst_15 [1] : vector<16x128xf32> to vector<16xf32>
      %18 = vector.shape_cast %17 : vector<16xf32> to vector<16x1xf32>
      %cst_16 = arith.constant 3.125000e-02 : f32
      %19 = vector.broadcast %cst_16 : f32 to vector<16x1xf32>
      %20 = arith.mulf %18, %19 : vector<16x1xf32>
      %21 = arith.mulf %16, %16 : vector<16x128xf32>
      %cst_17 = arith.constant dense<0.000000e+00> : vector<16xf32>
      %22 = vector.multi_reduction <add>, %21, %cst_17 [1] : vector<16x128xf32> to vector<16xf32>
      %23 = vector.shape_cast %22 : vector<16xf32> to vector<16x1xf32>
      %cst_18 = arith.constant 3.125000e-02 : f32
      %24 = vector.broadcast %cst_18 : f32 to vector<16x1xf32>
      %25 = arith.mulf %23, %24 : vector<16x1xf32>
      %26 = arith.mulf %20, %20 : vector<16x1xf32>
      %27 = arith.subf %25, %26 : vector<16x1xf32>
      %cst_19 = arith.constant 0.000000e+00 : f32
      %28 = vector.broadcast %cst_19 : f32 to vector<16x1xf32>
      %29 = arith.maximumf %27, %28 : vector<16x1xf32>
      %cst_20 = arith.constant 9.99999974E-6 : f32
      %30 = vector.broadcast %cst_20 : f32 to vector<16x1xf32>
      %31 = arith.addf %29, %30 : vector<16x1xf32>
      %32 = math.rsqrt %31 : vector<16x1xf32>
      %c0_21 = arith.constant 0 : index
      %c0_22 = arith.constant 0 : index
      %33 = vector.load %arg5[%c0_21, %c0_22] : memref<1x128xf32, #tpu.memory_space<vmem>>, vector<1x128xf32>
      %34 = vector.broadcast %32 : vector<16x1xf32> to vector<16x128xf32>
      %35 = vector.broadcast %33 : vector<1x128xf32> to vector<16x128xf32>
      %36 = arith.mulf %34, %35 : vector<16x128xf32>
      %37 = vector.broadcast %20 : vector<16x1xf32> to vector<16x128xf32>
      %38 = arith.subf %16, %37 : vector<16x128xf32>
      %39 = arith.mulf %38, %36 : vector<16x128xf32>
      %c0_23 = arith.constant 0 : index
      %c0_24 = arith.constant 0 : index
      %40 = vector.load %arg6[%c0_23, %c0_24] : memref<1x128xf32, #tpu.memory_space<vmem>>, vector<1x128xf32>
      %41 = vector.broadcast %40 : vector<1x128xf32> to vector<16x128xf32>
      %42 = arith.addf %39, %41 : vector<16x128xf32>
      %cst_25 = arith.constant 0.000000e+00 : f32
      %43 = vector.broadcast %cst_25 : f32 to vector<16x128xf32>
      %44 = arith.maximumf %42, %43 : vector<16x128xf32>
      %45 = arith.truncf %44 : vector<16x128xf32> to vector<16x128xbf16>
      %c0_26 = arith.constant 0 : index
      %c0_27 = arith.constant 0 : index
      %46 = vector.load %arg10[%c0_26, %c0_27] : memref<16x128xbf16, #tpu.memory_space<vmem>>, vector<16x128xbf16>
      tpu.vector_store %arg10[%c0_26, %c0_27], %45 {strides = array<i32>} : memref<16x128xbf16, #tpu.memory_space<vmem>>, vector<16x128xbf16>,
    } else {
    }
    %c0 = arith.constant 0 : index
    %c0_1 = arith.constant 0 : index
    %3 = vector.load %arg10[%c0, %c0_1] : memref<16x128xbf16, #tpu.memory_space<vmem>>, vector<16x128xbf16>
    %c0_2 = arith.constant 0 : index
    %c0_3 = arith.constant 0 : index
    %4 = vector.load %arg7[%c0_2, %c0_3] : memref<128x128xbf16, #tpu.memory_space<vmem>>, vector<128x128xbf16>
    %cst = arith.constant dense<0.000000e+00> : vector<16x128xf32>
    %5 = tpu.matmul %3, %4, %cst {dimension_numbers = #tpu.dot_dimension_numbers<[1], [0], [0], [1], [0, 0, 1, 1], [], []>} : vector<16x128xbf16>, vector<128x128xbf16>, vector<16x128xf32> -> vector<16x128xf32>
    %c0_4 = arith.constant 0 : index
    %c0_5 = arith.constant 0 : index
    %6 = vector.load %arg8[%c0_4, %c0_5] : memref<1x128xf32, #tpu.memory_space<vmem>>, vector<1x128xf32>
    %7 = vector.broadcast %6 : vector<1x128xf32> to vector<16x128xf32>
    %8 = arith.addf %5, %7 : vector<16x128xf32>
    %c0_6 = arith.constant 0 : index
    %c0_7 = arith.constant 0 : index
    %9 = vector.load %arg9[%c0_6, %c0_7] : memref<16x128xf32, #tpu.memory_space<vmem>>, vector<16x128xf32>
    tpu.vector_store %arg9[%c0_6, %c0_7], %8 {strides = array<i32>} : memref<16x128xf32, #tpu.memory_space<vmem>>, vector<16x128xf32>,
    return
  }
  func.func @transform_0(%arg0: i32, %arg1: i32) -> (i32, i32) {
    %c0_i32 = arith.constant 0 : i32
    %c0_i32_0 = arith.constant 0 : i32
    return %arg0, %c0_i32 : i32, i32
  }
  func.func @transform_1(%arg0: i32, %arg1: i32) -> (i32, i32) {
    %c0_i32 = arith.constant 0 : i32
    %c0_i32_0 = arith.constant 0 : i32
    %c0_i32_1 = arith.constant 0 : i32
    return %c0_i32, %c0_i32_0 : i32, i32
  }
  func.func @transform_2(%arg0: i32, %arg1: i32) -> (i32, i32) {
    %c0_i32 = arith.constant 0 : i32
    %c0_i32_0 = arith.constant 0 : i32
    %c0_i32_1 = arith.constant 0 : i32
    return %c0_i32, %c0_i32_0 : i32, i32
  }
  func.func @transform_3(%arg0: i32, %arg1: i32) -> (i32, i32) {
    %c0_i32 = arith.constant 0 : i32
    %c0_i32_0 = arith.constant 0 : i32
    %c0_i32_1 = arith.constant 0 : i32
    return %c0_i32, %c0_i32_0 : i32, i32
  }
  func.func @transform_4(%arg0: i32, %arg1: i32) -> (i32, i32) {
    %c0_i32 = arith.constant 0 : i32
    %c0_i32_0 = arith.constant 0 : i32
    %c0_i32_1 = arith.constant 0 : i32
    return %c0_i32, %c0_i32_0 : i32, i32
  }
  func.func @transform_5(%arg0: i32, %arg1: i32) -> (i32, i32) {
    %c0_i32 = arith.constant 0 : i32
    %c0_i32_0 = arith.constant 0 : i32
    return %c0_i32, %arg1 : i32, i32
  }
  func.func @transform_6(%arg0: i32, %arg1: i32) -> (i32, i32) {
    %c0_i32 = arith.constant 0 : i32
    %c0_i32_0 = arith.constant 0 : i32
    return %c0_i32, %arg1 : i32, i32
  }
  func.func @transform_7(%arg0: i32, %arg1: i32) -> (i32, i32) {
    %c0_i32 = arith.constant 0 : i32
    return %arg0, %arg1 : i32, i32
  }
}

module attributes {stable_mosaic.version = 11 : i64} {
  func.func @kernel(%arg0: i32, %arg1: i32, %arg2: memref<16x128xf32, #tpu.memory_space<vmem>>, %arg3: memref<128x128xbf16, #tpu.memory_space<vmem>>, %arg4: memref<1x128xf32, #tpu.memory_space<vmem>>, %arg5: memref<1x128xf32, #tpu.memory_space<vmem>>, %arg6: memref<1x128xf32, #tpu.memory_space<vmem>>, %arg7: memref<128x128xbf16, #tpu.memory_space<vmem>>, %arg8: memref<1x128xf32, #tpu.memory_space<vmem>>, %arg9: memref<16x128xf32, #tpu.memory_space<vmem>>, %arg10: memref<16x128xbf16, #tpu.memory_space<vmem>>) attributes {dimension_semantics = [#tpu.dimension_semantics<parallel>, #tpu.dimension_semantics<arbitrary>], iteration_bounds = array<i64: 1, 1>, scalar_prefetch = 0 : i64, scratch_operands = 1 : i64, tpu.core_type = #tpu.core_type<tc>, window_params = [{transform_indices = @transform_0, window_bounds = array<i64: 16, 128>}, {pipeline_mode = #tpu.pipeline_mode<synchronous>, transform_indices = @transform_1, window_bounds = array<i64: 128, 128>}, {pipeline_mode = #tpu.pipeline_mode<synchronous>, transform_indices = @transform_2, window_bounds = array<i64: 1, 128>}, {pipeline_mode = #tpu.pipeline_mode<synchronous>, transform_indices = @transform_3, window_bounds = array<i64: 1, 128>}, {pipeline_mode = #tpu.pipeline_mode<synchronous>, transform_indices = @transform_4, window_bounds = array<i64: 1, 128>}, {transform_indices = @transform_5, window_bounds = array<i64: 128, 128>}, {transform_indices = @transform_6, window_bounds = array<i64: 1, 128>}, {transform_indices = @transform_7, window_bounds = array<i64: 16, 128>}]} {
    %c0_i32 = arith.constant 0 : i32
    %0 = arith.cmpi eq, %arg1, %c0_i32 : i32
    %1 = arith.extui %0 : i1 to i32
    %c0_i32_0 = arith.constant 0 : i32
    %2 = arith.cmpi ne, %1, %c0_i32_0 : i32
    scf.if %2 {
      %c0_8 = arith.constant 0 : index
      %c0_9 = arith.constant 0 : index
      %10 = vector.load %arg2[%c0_8, %c0_9] : memref<16x128xf32, #tpu.memory_space<vmem>>, vector<16x128xf32>
      %11 = arith.truncf %10 : vector<16x128xf32> to vector<16x128xbf16>
      %c0_10 = arith.constant 0 : index
      %c0_11 = arith.constant 0 : index
      %12 = vector.load %arg3[%c0_10, %c0_11] : memref<128x128xbf16, #tpu.memory_space<vmem>>, vector<128x128xbf16>
      %cst_12 = arith.constant dense<0.000000e+00> : vector<16x128xf32>
      %13 = tpu.matmul %11, %12, %cst_12 {dimension_numbers = #tpu.dot_dimension_numbers<[1], [0], [0], [1], [0, 0, 1, 1], [], []>} : vector<16x128xbf16>, vector<128x128xbf16>, vector<16x128xf32> -> vector<16x128xf32>
      %c0_13 = arith.constant 0 : index
      %c0_14 = arith.constant 0 : index
      %14 = vector.load %arg4[%c0_13, %c0_14] : memref<1x128xf32, #tpu.memory_space<vmem>>, vector<1x128xf32>
      %15 = vector.broadcast %14 : vector<1x128xf32> to vector<16x128xf32>
      %16 = arith.addf %13, %15 : vector<16x128xf32>
      %cst_15 = arith.constant dense<0.000000e+00> : vector<16xf32>
      %17 = vector.multi_reduction <add>, %16, %cst_15 [1] : vector<16x128xf32> to vector<16xf32>
      %18 = vector.shape_cast %17 : vector<16xf32> to vector<16x1xf32>
      %cst_16 = arith.constant 3.125000e-02 : f32
      %19 = vector.broadcast %cst_16 : f32 to vector<16x1xf32>
      %20 = arith.mulf %18, %19 : vector<16x1xf32>
      %21 = arith.mulf %16, %16 : vector<16x128xf32>
      %cst_17 = arith.constant dense<0.000000e+00> : vector<16xf32>
      %22 = vector.multi_reduction <add>, %21, %cst_17 [1] : vector<16x128xf32> to vector<16xf32>
      %23 = vector.shape_cast %22 : vector<16xf32> to vector<16x1xf32>
      %cst_18 = arith.constant 3.125000e-02 : f32
      %24 = vector.broadcast %cst_18 : f32 to vector<16x1xf32>
      %25 = arith.mulf %23, %24 : vector<16x1xf32>
      %26 = arith.mulf %20, %20 : vector<16x1xf32>
      %27 = arith.subf %25, %26 : vector<16x1xf32>
      %cst_19 = arith.constant 0.000000e+00 : f32
      %28 = vector.broadcast %cst_19 : f32 to vector<16x1xf32>
      %29 = arith.maximumf %27, %28 : vector<16x1xf32>
      %cst_20 = arith.constant 9.99999974E-6 : f32
      %30 = vector.broadcast %cst_20 : f32 to vector<16x1xf32>
      %31 = arith.addf %29, %30 : vector<16x1xf32>
      %32 = math.rsqrt %31 : vector<16x1xf32>
      %c0_21 = arith.constant 0 : index
      %c0_22 = arith.constant 0 : index
      %33 = vector.load %arg5[%c0_21, %c0_22] : memref<1x128xf32, #tpu.memory_space<vmem>>, vector<1x128xf32>
      %34 = vector.broadcast %32 : vector<16x1xf32> to vector<16x128xf32>
      %35 = vector.broadcast %33 : vector<1x128xf32> to vector<16x128xf32>
      %36 = arith.mulf %34, %35 : vector<16x128xf32>
      %37 = vector.broadcast %20 : vector<16x1xf32> to vector<16x128xf32>
      %38 = arith.subf %16, %37 : vector<16x128xf32>
      %39 = arith.mulf %38, %36 : vector<16x128xf32>
      %c0_23 = arith.constant 0 : index
      %c0_24 = arith.constant 0 : index
      %40 = vector.load %arg6[%c0_23, %c0_24] : memref<1x128xf32, #tpu.memory_space<vmem>>, vector<1x128xf32>
      %41 = vector.broadcast %40 : vector<1x128xf32> to vector<16x128xf32>
      %42 = arith.addf %39, %41 : vector<16x128xf32>
      %cst_25 = arith.constant 0.000000e+00 : f32
      %43 = vector.broadcast %cst_25 : f32 to vector<16x128xf32>
      %44 = arith.maximumf %42, %43 : vector<16x128xf32>
      %45 = arith.truncf %44 : vector<16x128xf32> to vector<16x128xbf16>
      %c0_26 = arith.constant 0 : index
      %c0_27 = arith.constant 0 : index
      %46 = vector.load %arg10[%c0_26, %c0_27] : memref<16x128xbf16, #tpu.memory_space<vmem>>, vector<16x128xbf16>
      tpu.vector_store %arg10[%c0_26, %c0_27], %45 {strides = array<i32>} : memref<16x128xbf16, #tpu.memory_space<vmem>>, vector<16x128xbf16>,
    } else {
    }
    %c0 = arith.constant 0 : index
    %c0_1 = arith.constant 0 : index
    %3 = vector.load %arg10[%c0, %c0_1] : memref<16x128xbf16, #tpu.memory_space<vmem>>, vector<16x128xbf16>
    %c0_2 = arith.constant 0 : index
    %c0_3 = arith.constant 0 : index
    %4 = vector.load %arg7[%c0_2, %c0_3] : memref<128x128xbf16, #tpu.memory_space<vmem>>, vector<128x128xbf16>
    %cst = arith.constant dense<0.000000e+00> : vector<16x128xf32>
    %5 = tpu.matmul %3, %4, %cst {dimension_numbers = #tpu.dot_dimension_numbers<[1], [0], [0], [1], [0, 0, 1, 1], [], []>} : vector<16x128xbf16>, vector<128x128xbf16>, vector<16x128xf32> -> vector<16x128xf32>
    %c0_4 = arith.constant 0 : index
    %c0_5 = arith.constant 0 : index
    %6 = vector.load %arg8[%c0_4, %c0_5] : memref<1x128xf32, #tpu.memory_space<vmem>>, vector<1x128xf32>
    %7 = vector.broadcast %6 : vector<1x128xf32> to vector<16x128xf32>
    %8 = arith.addf %5, %7 : vector<16x128xf32>
    %c0_6 = arith.constant 0 : index
    %c0_7 = arith.constant 0 : index
    %9 = vector.load %arg9[%c0_6, %c0_7] : memref<16x128xf32, #tpu.memory_space<vmem>>, vector<16x128xf32>
    tpu.vector_store %arg9[%c0_6, %c0_7], %8 {strides = array<i32>} : memref<16x128xf32, #tpu.memory_space<vmem>>, vector<16x128xf32>,
    return
  }
  func.func @transform_0(%arg0: i32, %arg1: i32) -> (i32, i32) {
    %c0_i32 = arith.constant 0 : i32
    %c0_i32_0 = arith.constant 0 : i32
    return %arg0, %c0_i32 : i32, i32
  }
  func.func @transform_1(%arg0: i32, %arg1: i32) -> (i32, i32) {
    %c0_i32 = arith.constant 0 : i32
    %c0_i32_0 = arith.constant 0 : i32
    %c0_i32_1 = arith.constant 0 : i32
    return %c0_i32, %c0_i32_0 : i32, i32
  }
  func.func @transform_2(%arg0: i32, %arg1: i32) -> (i32, i32) {
    %c0_i32 = arith.constant 0 : i32
    %c0_i32_0 = arith.constant 0 : i32
    %c0_i32_1 = arith.constant 0 : i32
    return %c0_i32, %c0_i32_0 : i32, i32
  }
  func.func @transform_3(%arg0: i32, %arg1: i32) -> (i32, i32) {
    %c0_i32 = arith.constant 0 : i32
    %c0_i32_0 = arith.constant 0 : i32
    %c0_i32_1 = arith.constant 0 : i32
    return %c0_i32, %c0_i32_0 : i32, i32
  }
  func.func @transform_4(%arg0: i32, %arg1: i32) -> (i32, i32) {
    %c0_i32 = arith.constant 0 : i32
    %c0_i32_0 = arith.constant 0 : i32
    %c0_i32_1 = arith.constant 0 : i32
    return %c0_i32, %c0_i32_0 : i32, i32
  }
  func.func @transform_5(%arg0: i32, %arg1: i32) -> (i32, i32) {
    %c0_i32 = arith.constant 0 : i32
    %c0_i32_0 = arith.constant 0 : i32
    return %c0_i32, %arg1 : i32, i32
  }
  func.func @transform_6(%arg0: i32, %arg1: i32) -> (i32, i32) {
    %c0_i32 = arith.constant 0 : i32
    %c0_i32_0 = arith.constant 0 : i32
    return %c0_i32, %arg1 : i32, i32
  }
  func.func @transform_7(%arg0: i32, %arg1: i32) -> (i32, i32) {
    %c0_i32 = arith.constant 0 : i32
    return %arg0, %arg1 : i32, i32
  }
}

</mosaic_0001>

<llo_original>
// kernel: tpu_custom_call.1
$region0: #{tpu_custom_call.1}
  #allocation0 [shape = 'u32[]', space=smem, size = 0x4, offset = 0x4, fixed_abs, tag = 'smem constant byte address 0x4 - core index']
  #allocation1 [shape = 'u32[72,128]{1,0:T(1,128)}', space=vmem, size = 0x9000, scoped, tag = 'internal scratch']
  #allocation2 [shape = 'bf16[16,128]{1,0:T(8,128)(2,1)}', space=vmem, size = 0x1000, scoped, tag = 'scratch operand']
  %s0 = inlined_call_operand.hbm [shape: f32[16,128], index: 0, kind: input, shape index: {}]
  %s1 = inlined_call_operand.hbm [shape: bf16[128,128], index: 1, kind: input, shape index: {}]
  %s2 = inlined_call_operand.vmem [shape: f32[1,128], index: 2, kind: input, shape index: {}]
  %s3 = inlined_call_operand.vmem [shape: f32[1,128], index: 3, kind: input, shape index: {}]
  %s4 = inlined_call_operand.vmem [shape: f32[1,128], index: 4, kind: input, shape index: {}]
  %s5 = inlined_call_operand.hbm [shape: bf16[128,128], index: 5, kind: input, shape index: {}]
  %s6 = inlined_call_operand.vmem [shape: f32[1,128], index: 6, kind: input, shape index: {}]
  %s7 = inlined_call_operand.hbm [shape: f32[16,128], index: 7, kind: output, shape index: {}]
  %s8 = sld [smem:[#allocation0]]
  $region54: #{tpu_custom_call.1} parent=0
    _
  %s10 = ssub.s32 1, %s8
  %s11 = scalar_select 0, %s10, %s8
  $region1: #{tpu_custom_call.1} parent=0
    #allocation3 [shape = 'u8[8192]{0}', space=vmem, size = 0x2000, scoped, tag = 'input window, operand 0, single buffered']
    #allocation4 [shape = 's32[1]{0}', space=sflag, size = 0x4, scoped, tag = 'scoped memory for tpu_custom_call.1']
    #allocation5 [shape = 's32[1]{0}', space=sflag, size = 0x4, scoped, tag = 'scoped memory for tpu_custom_call.1']
    #allocation6 [shape = 'u8[32768]{0}', space=vmem, size = 0x8000, scoped, tag = 'input window, operand 1, single buffered']
    #allocation7 [shape = 's32[1]{0}', space=sflag, size = 0x4, scoped, tag = 'scoped memory for tpu_custom_call.1']
    #allocation8 [shape = 'u8[32768]{0}', space=vmem, size = 0x8000, scoped, tag = 'input window, operand 5, single buffered']
    #allocation9 [shape = 'u8[8192]{0}', space=vmem, size = 0x2000, scoped, tag = 'output window, operand 0, single buffered']
    %12 = vsyncpa [#allocation4], 0
    %13 = vsyncpa [#allocation7], 0
    %14 = vsyncpa [#allocation5], 0
    // Predicated region
    $region2: #{tpu_custom_call.1} parent=1 // pred_check
      _
    $region3: #{tpu_custom_call.1} parent=1 // pred_check_branch
      %16 = sbr.rel (0) target = $region5
    $region4: #{tpu_custom_call.1} parent=1 // pred_region
      %18 = vsyncadd [#allocation4], 0
      %s19 = sshll.u32 %s0, 4
      %s20 = int_to_ptr.hbm [resolvable:$true] %s19
      %s21 = sshll.u32 [#allocation3], 4
      %s22 = int_to_ptr.vmem [resolvable:$true] %s21
      %27 = dma.hbm_to_vmem [thread:$0]  %s20, 256, %s22, [#allocation4], 128, 128, 8
    $region5: #{tpu_custom_call.1} parent=1 // pred_fallthru
      _
    // Predicated region
    $region6: #{tpu_custom_call.1} parent=1 // pred_check
      _
    $region7: #{tpu_custom_call.1} parent=1 // pred_check_branch
      %29 = sbr.rel (0) target = $region9
    $region8: #{tpu_custom_call.1} parent=1 // pred_region
      %31 = vsyncadd [#allocation7], 0
      %s32 = sshll.u32 %s1, 4
      %s33 = int_to_ptr.hbm [resolvable:$true] %s32
      %s34 = sshll.u32 [#allocation6], 4
      %s35 = int_to_ptr.vmem [resolvable:$true] %s34
      %40 = dma.hbm_to_vmem [thread:$0]  %s33, 1024, %s35, [#allocation7], 64, 64, 4
    $region9: #{tpu_custom_call.1} parent=1 // pred_fallthru
      _
    // Predicated region
    $region10: #{tpu_custom_call.1} parent=1 // pred_check
      _
    $region11: #{tpu_custom_call.1} parent=1 // pred_check_branch
      %42 = sbr.rel (0) target = $region13
    $region12: #{tpu_custom_call.1} parent=1 // pred_region
      _
    $region13: #{tpu_custom_call.1} parent=1 // pred_fallthru
      _
    // Predicated region
    $region14: #{tpu_custom_call.1} parent=1 // pred_check
      _
    $region15: #{tpu_custom_call.1} parent=1 // pred_check_branch
      %44 = sbr.rel (0) target = $region17
    $region16: #{tpu_custom_call.1} parent=1 // pred_region
      _
    $region17: #{tpu_custom_call.1} parent=1 // pred_fallthru
      _
    // Predicated region
    $region18: #{tpu_custom_call.1} parent=1 // pred_check
      _
    $region19: #{tpu_custom_call.1} parent=1 // pred_check_branch
      %46 = sbr.rel (0) target = $region21
    $region20: #{tpu_custom_call.1} parent=1 // pred_region
      _
    $region21: #{tpu_custom_call.1} parent=1 // pred_fallthru
      _
    // Predicated region
    $region22: #{tpu_custom_call.1} parent=1 // pred_check
      _
    $region23: #{tpu_custom_call.1} parent=1 // pred_check_branch
      %48 = sbr.rel (0) target = $region25
    $region24: #{tpu_custom_call.1} parent=1 // pred_region
      %50 = vsyncadd [#allocation7], 0
      %s51 = sshll.u32 %s5, 4
      %s52 = int_to_ptr.hbm [resolvable:$true] %s51
      %s53 = sshll.u32 [#allocation8], 4
      %s54 = int_to_ptr.vmem [resolvable:$true] %s53
      %59 = dma.hbm_to_vmem [thread:$0]  %s52, 1024, %s54, [#allocation7], 64, 64, 4
    $region25: #{tpu_custom_call.1} parent=1 // pred_fallthru
      _
    // Predicated region
    $region26: #{tpu_custom_call.1} parent=1 // pred_check
      _
    $region27: #{tpu_custom_call.1} parent=1 // pred_check_branch
      %61 = sbr.rel (0) target = $region29
    $region28: #{tpu_custom_call.1} parent=1 // pred_region
      _
    $region29: #{tpu_custom_call.1} parent=1 // pred_fallthru
      _
    // Predicated region
    $region30: #{tpu_custom_call.1} parent=1 // pred_check
      _
    $region31: #{tpu_custom_call.1} parent=1 // pred_check_branch
      %63 = sbr.rel (0) target = $region33
    $region32: #{tpu_custom_call.1} parent=1 // pred_region
      %65 = dma.done [#allocation4], 256
    $region33: #{tpu_custom_call.1} parent=1 // pred_fallthru
      _
    // Predicated region
    $region34: #{tpu_custom_call.1} parent=1 // pred_check
      _
    $region35: #{tpu_custom_call.1} parent=1 // pred_check_branch
      %67 = sbr.rel (0) target = $region37
    $region36: #{tpu_custom_call.1} parent=1 // pred_region
      %69 = dma.done [#allocation7], 1024
    $region37: #{tpu_custom_call.1} parent=1 // pred_fallthru
      _
    // Predicated region
    $region38: #{tpu_custom_call.1} parent=1 // pred_check
      _
    $region39: #{tpu_custom_call.1} parent=1 // pred_check_branch
      %71 = sbr.rel (0) target = $region41
    $region40: #{tpu_custom_call.1} parent=1 // pred_region
      %73 = dma.done [#allocation7], 1024
    $region41: #{tpu_custom_call.1} parent=1 // pred_fallthru
      _
    %p74 = scmp.eq.s32.totalorder 0, 0
    // Predicated region
    $region42: #{tpu_custom_call.1} parent=1 // pred_check
      %p75 = pneg %p74
    $region43: #{tpu_custom_call.1} parent=1 // pred_check_branch
      %77 = sbr.rel (%p75) target = $region45
    $region44: #{tpu_custom_call.1} parent=1 // pred_region
      %v78 = vld [vmem:[#allocation3] sm:$0xff]
      %v79 = vld [vmem:[#allocation3 + $0x8] sm:$0xff]
      %v80 = vpack.c.bf16 %v79, %v78
      %v81 = vld [vmem:[#allocation6] sm:$0xf]
      %v82 = vld [vmem:[#allocation6 + $0x4] sm:$0xf]
      %v83 = vld [vmem:[#allocation6 + $0x8] sm:$0xf]
      %v84 = vld [vmem:[#allocation6 + $0xc] sm:$0xf]
      %v85 = vld [vmem:[#allocation6 + $0x10] sm:$0xf]
      %v86 = vld [vmem:[#allocation6 + $0x14] sm:$0xf]
      %v87 = vld [vmem:[#allocation6 + $0x18] sm:$0xf]
      %v88 = vld [vmem:[#allocation6 + $0x1c] sm:$0xf]
      %v89 = vld [vmem:[#allocation6 + $0x20] sm:$0xf]
      %v90 = vld [vmem:[#allocation6 + $0x24] sm:$0xf]
      %v91 = vld [vmem:[#allocation6 + $0x28] sm:$0xf]
      %v92 = vld [vmem:[#allocation6 + $0x2c] sm:$0xf]
      %v93 = vld [vmem:[#allocation6 + $0x30] sm:$0xf]
      %v94 = vld [vmem:[#allocation6 + $0x34] sm:$0xf]
      %v95 = vld [vmem:[#allocation6 + $0x38] sm:$0xf]
      %v96 = vld [vmem:[#allocation6 + $0x3c] sm:$0xf]
      %v97 = vld [vmem:[%s2] sm:$0x1]
      %v99 = vperm.slane %v97, 0
      %v117 = vunpack.c.l.b16 %v81
      %v118 = vunpack.c.l.b16 %v82
      %v119 = vunpack.c.l.b16 %v83
      %v120 = vunpack.c.l.b16 %v84
      %v121 = vunpack.c.l.b16 %v85
      %v122 = vunpack.c.l.b16 %v86
      %v123 = vunpack.c.l.b16 %v87
      %v124 = vunpack.c.l.b16 %v88
      %v125 = vunpack.c.l.b16 %v89
      %v126 = vunpack.c.l.b16 %v90
      %v127 = vunpack.c.l.b16 %v91
      %v128 = vunpack.c.l.b16 %v92
      %v129 = vunpack.c.l.b16 %v93
      %v130 = vunpack.c.l.b16 %v94
      %v131 = vunpack.c.l.b16 %v95
      %v132 = vunpack.c.l.b16 %v96
      %v133 = vpack.c.b16 %v118, %v117
      %v134 = vpack.c.b16 %v120, %v119
      %v135 = vpack.c.b16 %v122, %v121
      %v136 = vpack.c.b16 %v124, %v123
      %v137 = vpack.c.b16 %v126, %v125
      %v138 = vpack.c.b16 %v128, %v127
      %v139 = vpack.c.b16 %v130, %v129
      %v140 = vpack.c.b16 %v132, %v131
      %149 = vmatpush.bf16.msra.mxu0 %v140
      %150 = vmatpush.bf16.msra.mxu0 %v139
      %151 = vmatpush.bf16.msra.mxu0 %v138
      %152 = vmatpush.bf16.msra.mxu0 %v137
      %153 = vmatpush.bf16.msra.mxu0 %v136
      %154 = vmatpush.bf16.msra.mxu0 %v135
      %155 = vmatpush.bf16.msra.mxu0 %v134
      %156 = vmatpush.bf16.msra.mxu0 %v133
      %157 = vmatmul.bf16.gmra.mxu0 %v80
      %v158 = vpop.f32.mrf.mxu0
      %v159 = vadd.f32 %v99, %v158
      %v160 = vpop.f32.mrf.mxu0
      %v161 = vadd.f32 %v99, %v160
      %162 = vdwg.mxu0
      %163 = vadd.xlane.f32.xlu0 %v159
      %v164 = vpop.xlane.xlu0 %163
      %165 = vadd.xlane.f32.xlu0 %v161
      %v166 = vpop.xlane.xlu0 %165
      %v167 = vmul.f32 %v164, 0.03125
      %v168 = vmul.f32 %v166, 0.03125
      %v169 = vmul.f32 %v159, %v159
      %v170 = vmul.f32 %v161, %v161
      %171 = vadd.xlane.f32.xlu0 %v169
      %v172 = vpop.xlane.xlu0 %171
      %173 = vadd.xlane.f32.xlu0 %v170
      %v174 = vpop.xlane.xlu0 %173
      %v175 = vmul.f32 %v172, 0.03125
      %v176 = vmul.f32 %v174, 0.03125
      %v177 = vmul.f32 %v167, %v167
      %v178 = vmul.f32 %v168, %v168
      %v179 = vsub.f32 %v175, %v177
      %v180 = vsub.f32 %v176, %v178
      %v181 = vmax.f32 %v179, 0.0
      %v182 = vmax.f32 %v180, 0.0
      %v183 = vadd.f32 %v181, 1e-05
      %v184 = vadd.f32 %v182, 1e-05
      %v185 = vrsqrt.pop %v183
      %v186 = vmul.f32 %v185, %v183
      %v187 = vmul.f32 %v186, %v185
      %v188 = vmul.f32 0.5, %v187
      %v189 = vsub.f32 1.5, %v188
      %v190 = vmul.f32 %v185, %v189
      %vm191 = vweird.f32 %v183
      %vm192 = vweird.f32 %v185
      %vm193 = vmor %vm191, %vm192
      %v194 = vsel %vm193, %v185, %v190
      %v195 = vrsqrt.pop %v184
      %v196 = vmul.f32 %v195, %v184
      %v197 = vmul.f32 %v196, %v195
      %v198 = vmul.f32 0.5, %v197
      %v199 = vsub.f32 1.5, %v198
      %v200 = vmul.f32 %v195, %v199
      %vm201 = vweird.f32 %v184
      %vm202 = vweird.f32 %v195
      %vm203 = vmor %vm201, %vm202
      %v204 = vsel %vm203, %v195, %v200
      %v205 = vld [vmem:[%s3] sm:$0x1]
      %v207 = vperm.slane %v205, 0
      %v209 = vmul.f32 %v194, %v207
      %v210 = vmul.f32 %v204, %v207
      %v211 = vsub.f32 %v159, %v167
      %v212 = vsub.f32 %v161, %v168
      %v213 = vmul.f32 %v211, %v209
      %v214 = vmul.f32 %v212, %v210
      %v215 = vld [vmem:[%s4] sm:$0x1]
      %v217 = vperm.slane %v215, 0
      %v219 = vadd.f32 %v213, %v217
      %v220 = vadd.f32 %v214, %v217
      %v221 = vmax.f32 %v219, 0.0
      %v222 = vmax.f32 %v220, 0.0
      %v223 = vpack.c.bf16 %v221, %v221
      %v224 = vpack.c.bf16 %v222, %v222
      %225 = vst [vmem:[#allocation2] sm:$0xf] %v223
      %226 = vst [vmem:[#allocation2 + $0x4] sm:$0xf] %v224
    $region45: #{tpu_custom_call.1} parent=1 // pred_fallthru
      _
    %v227 = vld [vmem:[#allocation2] sm:$0xf]
    %v228 = vld [vmem:[#allocation2 + $0x4] sm:$0xf]
    %v229 = vld [vmem:[#allocation8] sm:$0xf]
    %v230 = vld [vmem:[#allocation8 + $0x4] sm:$0xf]
    %v231 = vld [vmem:[#allocation8 + $0x8] sm:$0xf]
    %v232 = vld [vmem:[#allocation8 + $0xc] sm:$0xf]
    %v233 = vld [vmem:[#allocation8 + $0x10] sm:$0xf]
    %v234 = vld [vmem:[#allocation8 + $0x14] sm:$0xf]
    %v235 = vld [vmem:[#allocation8 + $0x18] sm:$0xf]
    %v236 = vld [vmem:[#allocation8 + $0x1c] sm:$0xf]
    %v237 = vld [vmem:[#allocation8 + $0x20] sm:$0xf]
    %v238 = vld [vmem:[#allocation8 + $0x24] sm:$0xf]
    %v239 = vld [vmem:[#allocation8 + $0x28] sm:$0xf]
    %v240 = vld [vmem:[#allocation8 + $0x2c] sm:$0xf]
    %v241 = vld [vmem:[#allocation8 + $0x30] sm:$0xf]
    %v242 = vld [vmem:[#allocation8 + $0x34] sm:$0xf]
    %v243 = vld [vmem:[#allocation8 + $0x38] sm:$0xf]
    %v244 = vld [vmem:[#allocation8 + $0x3c] sm:$0xf]
    %v245 = vld [vmem:[%s6] sm:$0x1]
    %v247 = vperm.slane %v245, 0
    %v251 = vunpack.c.l.b16 %v227
    %v252 = vunpack.c.l.b16 %v228
    %v253 = vpack.c.b16 %v252, %v251
    %v271 = vunpack.c.l.b16 %v229
    %v272 = vunpack.c.l.b16 %v230
    %v273 = vunpack.c.l.b16 %v231
    %v274 = vunpack.c.l.b16 %v232
    %v275 = vunpack.c.l.b16 %v233
    %v276 = vunpack.c.l.b16 %v234
    %v277 = vunpack.c.l.b16 %v235
    %v278 = vunpack.c.l.b16 %v236
    %v279 = vunpack.c.l.b16 %v237
    %v280 = vunpack.c.l.b16 %v238
    %v281 = vunpack.c.l.b16 %v239
    %v282 = vunpack.c.l.b16 %v240
    %v283 = vunpack.c.l.b16 %v241
    %v284 = vunpack.c.l.b16 %v242
    %v285 = vunpack.c.l.b16 %v243
    %v286 = vunpack.c.l.b16 %v244
    %v287 = vpack.c.b16 %v272, %v271
    %v288 = vpack.c.b16 %v274, %v273
    %v289 = vpack.c.b16 %v276, %v275
    %v290 = vpack.c.b16 %v278, %v277
    %v291 = vpack.c.b16 %v280, %v279
    %v292 = vpack.c.b16 %v282, %v281
    %v293 = vpack.c.b16 %v284, %v283
    %v294 = vpack.c.b16 %v286, %v285
    %303 = vmatpush.bf16.msra.mxu0 %v294
    %304 = vmatpush.bf16.msra.mxu0 %v293
    %305 = vmatpush.bf16.msra.mxu0 %v292
    %306 = vmatpush.bf16.msra.mxu0 %v291
    %307 = vmatpush.bf16.msra.mxu0 %v290
    %308 = vmatpush.bf16.msra.mxu0 %v289
    %309 = vmatpush.bf16.msra.mxu0 %v288
    %310 = vmatpush.bf16.msra.mxu0 %v287
    %311 = vmatmul.bf16.gmra.mxu0 %v253
    %v312 = vpop.f32.mrf.mxu0
    %v313 = vadd.f32 %v247, %v312
    %v314 = vpop.f32.mrf.mxu0
    %v315 = vadd.f32 %v247, %v314
    %316 = vdwg.mxu0
    %317 = vst [vmem:[#allocation9] sm:$0xff] %v313
    %318 = vst [vmem:[#allocation9 + $0x8] sm:$0xff] %v315
    // Predicated region
    $region46: #{tpu_custom_call.1} parent=1 // pred_check
      _
    $region47: #{tpu_custom_call.1} parent=1 // pred_check_branch
      %320 = sbr.rel (0) target = $region49
    $region48: #{tpu_custom_call.1} parent=1 // pred_region
      %322 = vsyncadd [#allocation5], 0
      %s323 = sshll.u32 [#allocation9], 4
      %s324 = int_to_ptr.vmem [resolvable:$true] %s323
      %s325 = sshll.u32 %s7, 4
      %s326 = int_to_ptr.hbm [resolvable:$true] %s325
      %331 = dma.vmem_to_hbm [thread:$0]  %s324, 256, %s326, [#allocation5], 128, 128, 8
    $region49: #{tpu_custom_call.1} parent=1 // pred_fallthru
      _
    // Predicated region
    $region50: #{tpu_custom_call.1} parent=1 // pred_check
      _
    $region51: #{tpu_custom_call.1} parent=1 // pred_check_branch
      %333 = sbr.rel (0) target = $region53
    $region52: #{tpu_custom_call.1} parent=1 // pred_region
      %335 = dma.done [#allocation5], 256
    $region53: #{tpu_custom_call.1} parent=1 // pred_fallthru
      _
    %336 = vsyncpa [#allocation4], 1
    %337 = vsyncpa [#allocation7], 1
    %338 = vsyncpa [#allocation5], 1

// kernel: tpu_custom_call.1
$region0: #{tpu_custom_call.1}
  #allocation0 [shape = 'u32[]', space=smem, size = 0x4, offset = 0x4, fixed_abs, tag = 'smem constant byte address 0x4 - core index']
  #allocation1 [shape = 'u32[72,128]{1,0:T(1,128)}', space=vmem, size = 0x9000, scoped, tag = 'internal scratch']
  #allocation2 [shape = 'bf16[16,128]{1,0:T(8,128)(2,1)}', space=vmem, size = 0x1000, scoped, tag = 'scratch operand']
  %s0 = inlined_call_operand.hbm [shape: f32[16,128], index: 0, kind: input, shape index: {}]
  %s1 = inlined_call_operand.hbm [shape: bf16[128,128], index: 1, kind: input, shape index: {}]
  %s2 = inlined_call_operand.vmem [shape: f32[1,128], index: 2, kind: input, shape index: {}]
  %s3 = inlined_call_operand.vmem [shape: f32[1,128], index: 3, kind: input, shape index: {}]
  %s4 = inlined_call_operand.vmem [shape: f32[1,128], index: 4, kind: input, shape index: {}]
  %s5 = inlined_call_operand.hbm [shape: bf16[128,128], index: 5, kind: input, shape index: {}]
  %s6 = inlined_call_operand.vmem [shape: f32[1,128], index: 6, kind: input, shape index: {}]
  %s7 = inlined_call_operand.hbm [shape: f32[16,128], index: 7, kind: output, shape index: {}]
  %s8 = sld [smem:[#allocation0]]
  $region54: #{tpu_custom_call.1} parent=0
    _
  %s10 = ssub.s32 1, %s8
  %s11 = scalar_select 0, %s10, %s8
  $region1: #{tpu_custom_call.1} parent=0
    #allocation3 [shape = 'u8[8192]{0}', space=vmem, size = 0x2000, scoped, tag = 'input window, operand 0, single buffered']
    #allocation4 [shape = 's32[1]{0}', space=sflag, size = 0x4, scoped, tag = 'scoped memory for tpu_custom_call.1']
    #allocation5 [shape = 's32[1]{0}', space=sflag, size = 0x4, scoped, tag = 'scoped memory for tpu_custom_call.1']
    #allocation6 [shape = 'u8[32768]{0}', space=vmem, size = 0x8000, scoped, tag = 'input window, operand 1, single buffered']
    #allocation7 [shape = 's32[1]{0}', space=sflag, size = 0x4, scoped, tag = 'scoped memory for tpu_custom_call.1']
    #allocation8 [shape = 'u8[32768]{0}', space=vmem, size = 0x8000, scoped, tag = 'input window, operand 5, single buffered']
    #allocation9 [shape = 'u8[8192]{0}', space=vmem, size = 0x2000, scoped, tag = 'output window, operand 0, single buffered']
    %12 = vsyncpa [#allocation4], 0
    %13 = vsyncpa [#allocation7], 0
    %14 = vsyncpa [#allocation5], 0
    // Predicated region
    $region2: #{tpu_custom_call.1} parent=1 // pred_check
      _
    $region3: #{tpu_custom_call.1} parent=1 // pred_check_branch
      %16 = sbr.rel (0) target = $region5
    $region4: #{tpu_custom_call.1} parent=1 // pred_region
      %18 = vsyncadd [#allocation4], 0
      %s19 = sshll.u32 %s0, 4
      %s20 = int_to_ptr.hbm [resolvable:$true] %s19
      %s21 = sshll.u32 [#allocation3], 4
      %s22 = int_to_ptr.vmem [resolvable:$true] %s21
      %27 = dma.hbm_to_vmem [thread:$0]  %s20, 256, %s22, [#allocation4], 128, 128, 8
    $region5: #{tpu_custom_call.1} parent=1 // pred_fallthru
      _
    // Predicated region
    $region6: #{tpu_custom_call.1} parent=1 // pred_check
      _
    $region7: #{tpu_custom_call.1} parent=1 // pred_check_branch
      %29 = sbr.rel (0) target = $region9
    $region8: #{tpu_custom_call.1} parent=1 // pred_region
      %31 = vsyncadd [#allocation7], 0
      %s32 = sshll.u32 %s1, 4
      %s33 = int_to_ptr.hbm [resolvable:$true] %s32
      %s34 = sshll.u32 [#allocation6], 4
      %s35 = int_to_ptr.vmem [resolvable:$true] %s34
      %40 = dma.hbm_to_vmem [thread:$0]  %s33, 1024, %s35, [#allocation7], 64, 64, 4
    $region9: #{tpu_custom_call.1} parent=1 // pred_fallthru
      _
    // Predicated region
    $region10: #{tpu_custom_call.1} parent=1 // pred_check
      _
    $region11: #{tpu_custom_call.1} parent=1 // pred_check_branch
      %42 = sbr.rel (0) target = $region13
    $region12: #{tpu_custom_call.1} parent=1 // pred_region
      _
    $region13: #{tpu_custom_call.1} parent=1 // pred_fallthru
      _
    // Predicated region
    $region14: #{tpu_custom_call.1} parent=1 // pred_check
      _
    $region15: #{tpu_custom_call.1} parent=1 // pred_check_branch
      %44 = sbr.rel (0) target = $region17
    $region16: #{tpu_custom_call.1} parent=1 // pred_region
      _
    $region17: #{tpu_custom_call.1} parent=1 // pred_fallthru
      _
    // Predicated region
    $region18: #{tpu_custom_call.1} parent=1 // pred_check
      _
    $region19: #{tpu_custom_call.1} parent=1 // pred_check_branch
      %46 = sbr.rel (0) target = $region21
    $region20: #{tpu_custom_call.1} parent=1 // pred_region
      _
    $region21: #{tpu_custom_call.1} parent=1 // pred_fallthru
      _
    // Predicated region
    $region22: #{tpu_custom_call.1} parent=1 // pred_check
      _
    $region23: #{tpu_custom_call.1} parent=1 // pred_check_branch
      %48 = sbr.rel (0) target = $region25
    $region24: #{tpu_custom_call.1} parent=1 // pred_region
      %50 = vsyncadd [#allocation7], 0
      %s51 = sshll.u32 %s5, 4
      %s52 = int_to_ptr.hbm [resolvable:$true] %s51
      %s53 = sshll.u32 [#allocation8], 4
      %s54 = int_to_ptr.vmem [resolvable:$true] %s53
      %59 = dma.hbm_to_vmem [thread:$0]  %s52, 1024, %s54, [#allocation7], 64, 64, 4
    $region25: #{tpu_custom_call.1} parent=1 // pred_fallthru
      _
    // Predicated region
    $region26: #{tpu_custom_call.1} parent=1 // pred_check
      _
    $region27: #{tpu_custom_call.1} parent=1 // pred_check_branch
      %61 = sbr.rel (0) target = $region29
    $region28: #{tpu_custom_call.1} parent=1 // pred_region
      _
    $region29: #{tpu_custom_call.1} parent=1 // pred_fallthru
      _
    // Predicated region
    $region30: #{tpu_custom_call.1} parent=1 // pred_check
      _
    $region31: #{tpu_custom_call.1} parent=1 // pred_check_branch
      %63 = sbr.rel (0) target = $region33
    $region32: #{tpu_custom_call.1} parent=1 // pred_region
      %65 = dma.done [#allocation4], 256
    $region33: #{tpu_custom_call.1} parent=1 // pred_fallthru
      _
    // Predicated region
    $region34: #{tpu_custom_call.1} parent=1 // pred_check
      _
    $region35: #{tpu_custom_call.1} parent=1 // pred_check_branch
      %67 = sbr.rel (0) target = $region37
    $region36: #{tpu_custom_call.1} parent=1 // pred_region
      %69 = dma.done [#allocation7], 1024
    $region37: #{tpu_custom_call.1} parent=1 // pred_fallthru
      _
    // Predicated region
    $region38: #{tpu_custom_call.1} parent=1 // pred_check
      _
    $region39: #{tpu_custom_call.1} parent=1 // pred_check_branch
      %71 = sbr.rel (0) target = $region41
    $region40: #{tpu_custom_call.1} parent=1 // pred_region
      %73 = dma.done [#allocation7], 1024
    $region41: #{tpu_custom_call.1} parent=1 // pred_fallthru
      _
    %p74 = scmp.eq.s32.totalorder 0, 0
    // Predicated region
    $region42: #{tpu_custom_call.1} parent=1 // pred_check
      %p75 = pneg %p74
    $region43: #{tpu_custom_call.1} parent=1 // pred_check_branch
      %77 = sbr.rel (%p75) target = $region45
    $region44: #{tpu_custom_call.1} parent=1 // pred_region
      %v78 = vld [vmem:[#allocation3] sm:$0xff]
      %v79 = vld [vmem:[#allocation3 + $0x8] sm:$0xff]
      %v80 = vpack.c.bf16 %v79, %v78
      %v81 = vld [vmem:[#allocation6] sm:$0xf]
      %v82 = vld [vmem:[#allocation6 + $0x4] sm:$0xf]
      %v83 = vld [vmem:[#allocation6 + $0x8] sm:$0xf]
      %v84 = vld [vmem:[#allocation6 + $0xc] sm:$0xf]
      %v85 = vld [vmem:[#allocation6 + $0x10] sm:$0xf]
      %v86 = vld [vmem:[#allocation6 + $0x14] sm:$0xf]
      %v87 = vld [vmem:[#allocation6 + $0x18] sm:$0xf]
      %v88 = vld [vmem:[#allocation6 + $0x1c] sm:$0xf]
      %v89 = vld [vmem:[#allocation6 + $0x20] sm:$0xf]
      %v90 = vld [vmem:[#allocation6 + $0x24] sm:$0xf]
      %v91 = vld [vmem:[#allocation6 + $0x28] sm:$0xf]
      %v92 = vld [vmem:[#allocation6 + $0x2c] sm:$0xf]
      %v93 = vld [vmem:[#allocation6 + $0x30] sm:$0xf]
      %v94 = vld [vmem:[#allocation6 + $0x34] sm:$0xf]
      %v95 = vld [vmem:[#allocation6 + $0x38] sm:$0xf]
      %v96 = vld [vmem:[#allocation6 + $0x3c] sm:$0xf]
      %v97 = vld [vmem:[%s2] sm:$0x1]
      %v99 = vperm.slane %v97, 0
      %v117 = vunpack.c.l.b16 %v81
      %v118 = vunpack.c.l.b16 %v82
      %v119 = vunpack.c.l.b16 %v83
      %v120 = vunpack.c.l.b16 %v84
      %v121 = vunpack.c.l.b16 %v85
      %v122 = vunpack.c.l.b16 %v86
      %v123 = vunpack.c.l.b16 %v87
      %v124 = vunpack.c.l.b16 %v88
      %v125 = vunpack.c.l.b16 %v89
      %v126 = vunpack.c.l.b16 %v90
      %v127 = vunpack.c.l.b16 %v91
      %v128 = vunpack.c.l.b16 %v92
      %v129 = vunpack.c.l.b16 %v93
      %v130 = vunpack.c.l.b16 %v94
      %v131 = vunpack.c.l.b16 %v95
      %v132 = vunpack.c.l.b16 %v96
      %v133 = vpack.c.b16 %v118, %v117
      %v134 = vpack.c.b16 %v120, %v119
      %v135 = vpack.c.b16 %v122, %v121
      %v136 = vpack.c.b16 %v124, %v123
      %v137 = vpack.c.b16 %v126, %v125
      %v138 = vpack.c.b16 %v128, %v127
      %v139 = vpack.c.b16 %v130, %v129
      %v140 = vpack.c.b16 %v132, %v131
      %149 = vmatpush.bf16.msra.mxu0 %v140
      %150 = vmatpush.bf16.msra.mxu0 %v139
      %151 = vmatpush.bf16.msra.mxu0 %v138
      %152 = vmatpush.bf16.msra.mxu0 %v137
      %153 = vmatpush.bf16.msra.mxu0 %v136
      %154 = vmatpush.bf16.msra.mxu0 %v135
      %155 = vmatpush.bf16.msra.mxu0 %v134
      %156 = vmatpush.bf16.msra.mxu0 %v133
      %157 = vmatmul.bf16.gmra.mxu0 %v80
      %v158 = vpop.f32.mrf.mxu0
      %v159 = vadd.f32 %v99, %v158
      %v160 = vpop.f32.mrf.mxu0
      %v161 = vadd.f32 %v99, %v160
      %162 = vdwg.mxu0
      %163 = vadd.xlane.f32.xlu0 %v159
      %v164 = vpop.xlane.xlu0 %163
      %165 = vadd.xlane.f32.xlu0 %v161
      %v166 = vpop.xlane.xlu0 %165
      %v167 = vmul.f32 %v164, 0.03125
      %v168 = vmul.f32 %v166, 0.03125
      %v169 = vmul.f32 %v159, %v159
      %v170 = vmul.f32 %v161, %v161
      %171 = vadd.xlane.f32.xlu0 %v169
      %v172 = vpop.xlane.xlu0 %171
      %173 = vadd.xlane.f32.xlu0 %v170
      %v174 = vpop.xlane.xlu0 %173
      %v175 = vmul.f32 %v172, 0.03125
      %v176 = vmul.f32 %v174, 0.03125
      %v177 = vmul.f32 %v167, %v167
      %v178 = vmul.f32 %v168, %v168
      %v179 = vsub.f32 %v175, %v177
      %v180 = vsub.f32 %v176, %v178
      %v181 = vmax.f32 %v179, 0.0
      %v182 = vmax.f32 %v180, 0.0
      %v183 = vadd.f32 %v181, 1e-05
      %v184 = vadd.f32 %v182, 1e-05
      %v185 = vrsqrt.pop %v183
      %v186 = vmul.f32 %v185, %v183
      %v187 = vmul.f32 %v186, %v185
      %v188 = vmul.f32 0.5, %v187
      %v189 = vsub.f32 1.5, %v188
      %v190 = vmul.f32 %v185, %v189
      %vm191 = vweird.f32 %v183
      %vm192 = vweird.f32 %v185
      %vm193 = vmor %vm191, %vm192
      %v194 = vsel %vm193, %v185, %v190
      %v195 = vrsqrt.pop %v184
      %v196 = vmul.f32 %v195, %v184
      %v197 = vmul.f32 %v196, %v195
      %v198 = vmul.f32 0.5, %v197
      %v199 = vsub.f32 1.5, %v198
      %v200 = vmul.f32 %v195, %v199
      %vm201 = vweird.f32 %v184
      %vm202 = vweird.f32 %v195
      %vm203 = vmor %vm201, %vm202
      %v204 = vsel %vm203, %v195, %v200
      %v205 = vld [vmem:[%s3] sm:$0x1]
      %v207 = vperm.slane %v205, 0
      %v209 = vmul.f32 %v194, %v207
      %v210 = vmul.f32 %v204, %v207
      %v211 = vsub.f32 %v159, %v167
      %v212 = vsub.f32 %v161, %v168
      %v213 = vmul.f32 %v211, %v209
      %v214 = vmul.f32 %v212, %v210
      %v215 = vld [vmem:[%s4] sm:$0x1]
      %v217 = vperm.slane %v215, 0
      %v219 = vadd.f32 %v213, %v217
      %v220 = vadd.f32 %v214, %v217
      %v221 = vmax.f32 %v219, 0.0
      %v222 = vmax.f32 %v220, 0.0
      %v223 = vpack.c.bf16 %v221, %v221
      %v224 = vpack.c.bf16 %v222, %v222
      %225 = vst [vmem:[#allocation2] sm:$0xf] %v223
      %226 = vst [vmem:[#allocation2 + $0x4] sm:$0xf] %v224
    $region45: #{tpu_custom_call.1} parent=1 // pred_fallthru
      _
    %v227 = vld [vmem:[#allocation2] sm:$0xf]
    %v228 = vld [vmem:[#allocation2 + $0x4] sm:$0xf]
    %v229 = vld [vmem:[#allocation8] sm:$0xf]
    %v230 = vld [vmem:[#allocation8 + $0x4] sm:$0xf]
    %v231 = vld [vmem:[#allocation8 + $0x8] sm:$0xf]
    %v232 = vld [vmem:[#allocation8 + $0xc] sm:$0xf]
    %v233 = vld [vmem:[#allocation8 + $0x10] sm:$0xf]
    %v234 = vld [vmem:[#allocation8 + $0x14] sm:$0xf]
    %v235 = vld [vmem:[#allocation8 + $0x18] sm:$0xf]
    %v236 = vld [vmem:[#allocation8 + $0x1c] sm:$0xf]
    %v237 = vld [vmem:[#allocation8 + $0x20] sm:$0xf]
    %v238 = vld [vmem:[#allocation8 + $0x24] sm:$0xf]
    %v239 = vld [vmem:[#allocation8 + $0x28] sm:$0xf]
    %v240 = vld [vmem:[#allocation8 + $0x2c] sm:$0xf]
    %v241 = vld [vmem:[#allocation8 + $0x30] sm:$0xf]
    %v242 = vld [vmem:[#allocation8 + $0x34] sm:$0xf]
    %v243 = vld [vmem:[#allocation8 + $0x38] sm:$0xf]
    %v244 = vld [vmem:[#allocation8 + $0x3c] sm:$0xf]
    %v245 = vld [vmem:[%s6] sm:$0x1]
    %v247 = vperm.slane %v245, 0
    %v251 = vunpack.c.l.b16 %v227
    %v252 = vunpack.c.l.b16 %v228
    %v253 = vpack.c.b16 %v252, %v251
    %v271 = vunpack.c.l.b16 %v229
    %v272 = vunpack.c.l.b16 %v230
    %v273 = vunpack.c.l.b16 %v231
    %v274 = vunpack.c.l.b16 %v232
    %v275 = vunpack.c.l.b16 %v233
    %v276 = vunpack.c.l.b16 %v234
    %v277 = vunpack.c.l.b16 %v235
    %v278 = vunpack.c.l.b16 %v236
    %v279 = vunpack.c.l.b16 %v237
    %v280 = vunpack.c.l.b16 %v238
    %v281 = vunpack.c.l.b16 %v239
    %v282 = vunpack.c.l.b16 %v240
    %v283 = vunpack.c.l.b16 %v241
    %v284 = vunpack.c.l.b16 %v242
    %v285 = vunpack.c.l.b16 %v243
    %v286 = vunpack.c.l.b16 %v244
    %v287 = vpack.c.b16 %v272, %v271
    %v288 = vpack.c.b16 %v274, %v273
    %v289 = vpack.c.b16 %v276, %v275
    %v290 = vpack.c.b16 %v278, %v277
    %v291 = vpack.c.b16 %v280, %v279
    %v292 = vpack.c.b16 %v282, %v281
    %v293 = vpack.c.b16 %v284, %v283
    %v294 = vpack.c.b16 %v286, %v285
    %303 = vmatpush.bf16.msra.mxu0 %v294
    %304 = vmatpush.bf16.msra.mxu0 %v293
    %305 = vmatpush.bf16.msra.mxu0 %v292
    %306 = vmatpush.bf16.msra.mxu0 %v291
    %307 = vmatpush.bf16.msra.mxu0 %v290
    %308 = vmatpush.bf16.msra.mxu0 %v289
    %309 = vmatpush.bf16.msra.mxu0 %v288
    %310 = vmatpush.bf16.msra.mxu0 %v287
    %311 = vmatmul.bf16.gmra.mxu0 %v253
    %v312 = vpop.f32.mrf.mxu0
    %v313 = vadd.f32 %v247, %v312
    %v314 = vpop.f32.mrf.mxu0
    %v315 = vadd.f32 %v247, %v314
    %316 = vdwg.mxu0
    %317 = vst [vmem:[#allocation9] sm:$0xff] %v313
    %318 = vst [vmem:[#allocation9 + $0x8] sm:$0xff] %v315
    // Predicated region
    $region46: #{tpu_custom_call.1} parent=1 // pred_check
      _
    $region47: #{tpu_custom_call.1} parent=1 // pred_check_branch
      %320 = sbr.rel (0) target = $region49
    $region48: #{tpu_custom_call.1} parent=1 // pred_region
      %322 = vsyncadd [#allocation5], 0
      %s323 = sshll.u32 [#allocation9], 4
      %s324 = int_to_ptr.vmem [resolvable:$true] %s323
      %s325 = sshll.u32 %s7, 4
      %s326 = int_to_ptr.hbm [resolvable:$true] %s325
      %331 = dma.vmem_to_hbm [thread:$0]  %s324, 256, %s326, [#allocation5], 128, 128, 8
    $region49: #{tpu_custom_call.1} parent=1 // pred_fallthru
      _
    // Predicated region
    $region50: #{tpu_custom_call.1} parent=1 // pred_check
      _
    $region51: #{tpu_custom_call.1} parent=1 // pred_check_branch
      %333 = sbr.rel (0) target = $region53
    $region52: #{tpu_custom_call.1} parent=1 // pred_region
      %335 = dma.done [#allocation5], 256
    $region53: #{tpu_custom_call.1} parent=1 // pred_fallthru
      _
    %336 = vsyncpa [#allocation4], 1
    %337 = vsyncpa [#allocation7], 1
    %338 = vsyncpa [#allocation5], 1

</llo_original>
